<compile_context>
chip_gen: v6e
topology: v6e:2x2x1
jax: 0.10.0
libtpu: 0.0.40
codegen_flags: <defaults>
</compile_context>

<pallas_src>
import functools

import jax
import jax.numpy as jnp
import numpy as np
from jax.experimental import pallas as pl
from jax.experimental.pallas import tpu as pltpu


def _round_up(n, m):
    return ((n + m - 1) // m) * m


# ---------------------------------------------------------------------------
# LSTM-path kernel (skip=False): one fused MXU push + packed lane-dense out.
# ---------------------------------------------------------------------------
def _lstm_kernel(xhb_ref, c_ref, w_ref, b_ref, lwrow_ref, lb_ref, out_ref,
                 *, ic, hc, out_l):
    xhb = xhb_ref[...]                                   # (bb, ic+hc+1) bf16
    bin_u = xhb[:, ic + hc:ic + hc + 1].astype(jnp.float32)   # exact {0., 1.}

    # Single fused MXU push: [x, h, bin_u] @ [W_ih; W_hh; 0]  (f32 accumulate)
    z = (jnp.dot(xhb, w_ref[...], preferred_element_type=jnp.float32)
         + b_ref[...])                                   # (bb, 4H)

    # Gate order is (i, f, o, g): sigmoid on [:3H], tanh on [3H:].
    if (3 * hc) % 128 == 0:
        sig = jax.nn.sigmoid(z[:, :3 * hc])
        i_g = sig[:, 0 * hc:1 * hc]
        f_g = sig[:, 1 * hc:2 * hc]
        o_g = sig[:, 2 * hc:3 * hc]
        g_g = jnp.tanh(z[:, 3 * hc:])
    else:
        # hc too small for lane-aligned slices: full-vreg form, single compare.
        lane = jax.lax.broadcasted_iota(jnp.int32, z.shape, dimension=1)
        act = jnp.where(lane >= 3 * hc, jnp.tanh(z), jax.nn.sigmoid(z))
        i_g = act[:, 0 * hc:1 * hc]
        f_g = act[:, 1 * hc:2 * hc]
        o_g = act[:, 2 * hc:3 * hc]
        g_g = act[:, 3 * hc:4 * hc]

    c_new = f_g * c_ref[...] + i_g * g_g
    h_new = o_g * jnp.tanh(c_new)
    h_new = h_new * bin_u                                # module gates by round(u)
    c_new = c_new * bin_u

    # delta_u = sigmoid(<new_c, lin_w> + lin_b): VPU mul + lane reduce.
    d_u = jax.nn.sigmoid(
        jnp.sum(c_new * lwrow_ref[...], axis=-1, keepdims=True) + lb_ref[0])

    # One lane-dense packed store: [new_h | new_c | delta_u broadcast].
    pad = out_l - 2 * hc
    out_ref[...] = jnp.concatenate(
        [h_new, c_new, jnp.broadcast_to(d_u, (h_new.shape[0], pad))], axis=-1)


# ---------------------------------------------------------------------------
# Skip-path kernel (skip=True): elementwise only, no weights streamed.
# ---------------------------------------------------------------------------
def _skip_kernel(h_ref, c_ref, keep_ref, out_ref, *, hc, out_l):
    keep = keep_ref[...]                                 # (bb, 1) = 1 - bin_u
    h_new = h_ref[...] * keep
    c_new = c_ref[...] * keep
    pad = out_l - 2 * hc
    out_ref[...] = jnp.concatenate(
        [h_new, c_new, jnp.zeros((h_new.shape[0], pad), h_new.dtype)], axis=-1)


# ---------------------------------------------------------------------------
# Parameter init (matches nn.LSTMCell + xavier_normal_ Linear of the module),
# stored fused / pre-transposed / gate-reordered (i, f, o, g) for the kernel.
# ---------------------------------------------------------------------------
def init_params(key, ic, hc):
    k1, k2, k3, k4, k5 = jax.random.split(key, 5)
    bound = 1.0 / np.sqrt(hc)
    # Generated in PyTorch LSTMCell gate order (i, f, g, o), then reordered.
    w_ih = jax.random.uniform(k1, (ic, 4 * hc), minval=-bound, maxval=bound,
                              dtype=jnp.float32)
    w_hh = jax.random.uniform(k2, (hc, 4 * hc), minval=-bound, maxval=bound,
                              dtype=jnp.float32)
    b_ih = jax.random.uniform(k3, (4 * hc,), minval=-bound, maxval=bound,
                              dtype=jnp.float32)
    b_hh = jax.random.uniform(k4, (4 * hc,), minval=-bound, maxval=bound,
                              dtype=jnp.float32)

    def reorder(w):                                      # (i,f,g,o) -> (i,f,o,g)
        i, f, g, o = jnp.split(w, 4, axis=-1)
        return jnp.concatenate([i, f, o, g], axis=-1)

    # Fused, pre-transposed weight [W_ih; W_hh; 0] in bf16 (extra zero row for
    # the bin_u column folded into the activation slab).
    w = jnp.concatenate(
        [reorder(w_ih), reorder(w_hh), jnp.zeros((1, 4 * hc), jnp.float32)],
        axis=0).astype(jnp.bfloat16)
    b = reorder((b_ih + b_hh).reshape(1, 4 * hc))
    # nn.Linear(hc, 1): xavier_normal_ weight, bias filled with 1.
    std = np.sqrt(2.0 / (1 + hc))
    lin_w_row = (std * jax.random.normal(k5, (1, hc))).astype(jnp.float32)
    lin_b = jnp.full((1,), 1.0, dtype=jnp.float32)
    return dict(w=w, b=b, lin_w_row=lin_w_row, lin_b=lin_b)


# ---------------------------------------------------------------------------
# Wrapper
# ---------------------------------------------------------------------------
def _batch_tiling(B):
    """Pick (padded batch, batch block). Block second-minor dim multiple of 8."""
    Bp = _round_up(B, 8)
    if Bp <= 256:
        # TODO(synk): on v7x (2 TensorCores) split into >=2 grid steps when
        # Bp >= 16 so the "parallel" axis can shard; neutral on v5e/v6e.
        return Bp, Bp
    if Bp % 256 == 0:
        return Bp, 256
    Bp = _round_up(Bp, 128)
    return Bp, 128


def _pad_rows(a, Bp):
    B = a.shape[0]
    return a if B == Bp else jnp.pad(a, ((0, Bp - B), (0, 0)))


def skip_lstm_cell_forward(params, x, u, h, c, skip=False, delta_u=None):
    B, hc = h.shape
    ic = x.shape[-1]
    f32 = jnp.float32

    u = u.astype(f32)
    bin_u = jnp.round(u)                                 # STE forward (f32, exact)
    out_l = _round_up(2 * hc + 1, 128)                   # packed slab width
    Bp, bb = _batch_tiling(B)
    grid = (Bp // bb,)
    cparams = pltpu.CompilerParams(dimension_semantics=("parallel",))

    if not skip:
        # [x, h, bin_u] slab in bf16: one dense input stream, half the bytes.
        xhb = jnp.concatenate(
            [x.astype(f32), h.astype(f32), bin_u], axis=-1).astype(jnp.bfloat16)
        slab = pl.pallas_call(
            functools.partial(_lstm_kernel, ic=ic, hc=hc, out_l=out_l),
            grid=grid,
            in_specs=[
                pl.BlockSpec((bb, ic + hc + 1), lambda i: (i, 0)),     # [x,h,bin_u]
                pl.BlockSpec((bb, hc), lambda i: (i, 0)),              # c
                pl.BlockSpec((ic + hc + 1, 4 * hc), lambda i: (0, 0)), # fused W
                pl.BlockSpec((1, 4 * hc), lambda i: (0, 0)),           # fused bias
                pl.BlockSpec((1, hc), lambda i: (0, 0)),               # lin_w row
                pl.BlockSpec(memory_space=pltpu.MemorySpace.SMEM),     # lin_b
            ],
            out_specs=pl.BlockSpec((bb, out_l), lambda i: (i, 0)),     # packed slab
            out_shape=jax.ShapeDtypeStruct((Bp, out_l), f32),
            compiler_params=cparams,
        )(_pad_rows(xhb, Bp), _pad_rows(c.astype(f32), Bp),
          params["w"], params["b"], params["lin_w_row"], params["lin_b"])
        slab = slab[:B]
        new_h = slab[:, 0 * hc:1 * hc]
        new_c = slab[:, 1 * hc:2 * hc]
        d_u = slab[:, 2 * hc:2 * hc + 1]
        new_u = d_u * bin_u
    else:
        assert delta_u is not None
        keep = 1.0 - bin_u
        slab = pl.pallas_call(
            functools.partial(_skip_kernel, hc=hc, out_l=out_l),
            grid=grid,
            in_specs=[
                pl.BlockSpec((bb, hc), lambda i: (i, 0)),              # h
                pl.BlockSpec((bb, hc), lambda i: (i, 0)),              # c
                pl.BlockSpec((bb, 1), lambda i: (i, 0)),               # 1 - bin_u
            ],
            out_specs=pl.BlockSpec((bb, out_l), lambda i: (i, 0)),     # packed slab
            out_shape=jax.ShapeDtypeStruct((Bp, out_l), f32),
            compiler_params=cparams,
        )(_pad_rows(h.astype(f32), Bp), _pad_rows(c.astype(f32), Bp),
          _pad_rows(keep, Bp))
        slab = slab[:B]
        new_h = slab[:, 0 * hc:1 * hc]
        new_c = slab[:, 1 * hc:2 * hc]
        d_u = delta_u
        new_u = jnp.clip(u + delta_u, 0.0, 1.0) * keep

    # Trivial (B,1) lane-sparse epilogue stays in the wrapper.
    # Matches the PyTorch module exactly: yields +inf whenever new_u == 0.
    n_skips = jnp.ceil(0.5 / new_u) - 1.0
    return bin_u, new_u, (new_h, new_c), d_u, n_skips


# ---------------------------------------------------------------------------
# Pure-JAX reference (same bf16-matched math, no Pallas) for validation.
# ---------------------------------------------------------------------------
def _ref_forward(params, x, u, h, c, skip=False, delta_u=None):
    bin_u = jnp.round(u)
    if skip:
        keep = 1.0 - bin_u
        new_h = h * keep
        new_c = c * keep
        new_u = jnp.clip(u + delta_u, 0.0, 1.0) * keep
        d_u = delta_u
    else:
        hc = h.shape[-1]
        xhb = jnp.concatenate([x, h, bin_u], axis=-1).astype(jnp.bfloat16)
        z = (jnp.dot(xhb, params["w"], preferred_element_type=jnp.float32)
             + params["b"])
        # kernel gate order: (i, f, o, g)
        i_g = jax.nn.sigmoid(z[:, 0 * hc:1 * hc])
        f_g = jax.nn.sigmoid(z[:, 1 * hc:2 * hc])
        o_g = jax.nn.sigmoid(z[:, 2 * hc:3 * hc])
        g_g = jnp.tanh(z[:, 3 * hc:4 * hc])
        new_c = f_g * c + i_g * g_g
        new_h = o_g * jnp.tanh(new_c)
        new_h = new_h * bin_u
        new_c = new_c * bin_u
        d_u = jax.nn.sigmoid(
            jnp.sum(new_c * params["lin_w_row"], axis=-1, keepdims=True)
            + params["lin_b"][0])
        new_u = d_u * bin_u
    n_skips = jnp.ceil(0.5 / new_u) - 1.0
    return bin_u, new_u, (new_h, new_c), d_u, n_skips


if __name__ == "__main__":
    B, IC, HC = 8, 16, 32
    key = jax.random.PRNGKey(0)
    kp, kx, kh, kc, ku, kd = jax.random.split(key, 6)

    params = init_params(kp, IC, HC)
    x = jax.random.normal(kx, (B, IC), dtype=jnp.float32)
    h = jax.random.normal(kh, (B, HC), dtype=jnp.float32)
    c = jax.random.normal(kc, (B, HC), dtype=jnp.float32)
    u = jax.random.uniform(ku, (B, 1), dtype=jnp.float32)
    delta_u_in = jax.random.uniform(kd, (B, 1), dtype=jnp.float32)

    # skip=False path (fused LSTM cell + gating, single kernel)
    out = skip_lstm_cell_forward(params, x, u, h, c, skip=False)
    out = jax.block_until_ready(out)
    ref = _ref_forward(params, x, u, h, c, skip=False)

    # skip=True path (trace-time-specialized elementwise kernel, no weight DMA)
    out_s = skip_lstm_cell_forward(params, x, u, h, c, skip=True,
                                   delta_u=delta_u_in)
    out_s = jax.block_until_ready(out_s)
    ref_s = _ref_forward(params, x, u, h, c, skip=True, delta_u=delta_u_in)

    def _flatten(o):
        bin_u, new_u, (nh, nc), du, nsk = o
        return [bin_u, new_u, nh, nc, du, nsk]

    for got, exp in zip(_flatten(out) + _flatten(out_s),
                        _flatten(ref) + _flatten(ref_s)):
        assert np.allclose(np.asarray(got), np.asarray(exp),
                           rtol=2e-5, atol=2e-5), "mismatch vs reference"

    print("KERNEL_OK")
</pallas_src>

<mosaic_0001>
module attributes {stable_mosaic.version = 11 : i64} {
  func.func @_lstm_kernel(%arg0: i32, %arg1: memref<8x49xbf16, #tpu.memory_space<vmem>>, %arg2: memref<8x32xf32, #tpu.memory_space<vmem>>, %arg3: memref<49x128xbf16, #tpu.memory_space<vmem>>, %arg4: memref<1x128xf32, #tpu.memory_space<vmem>>, %arg5: memref<1x32xf32, #tpu.memory_space<vmem>>, %arg6: memref<1xf32, #tpu.memory_space<smem>>, %arg7: memref<8x128xf32, #tpu.memory_space<vmem>>) attributes {dimension_semantics = [#tpu.dimension_semantics<parallel>], iteration_bounds = array<i64: 1>, scalar_prefetch = 0 : i64, scratch_operands = 0 : i64, tpu.core_type = #tpu.core_type<tc>, window_params = [{transform_indices = @transform_0, window_bounds = array<i64: 8, 49>}, {transform_indices = @transform_1, window_bounds = array<i64: 8, 32>}, {pipeline_mode = #tpu.pipeline_mode<synchronous>, transform_indices = @transform_2, window_bounds = array<i64: 49, 128>}, {pipeline_mode = #tpu.pipeline_mode<synchronous>, transform_indices = @transform_3, window_bounds = array<i64: 1, 128>}, {pipeline_mode = #tpu.pipeline_mode<synchronous>, transform_indices = @transform_4, window_bounds = array<i64: 1, 32>}, {transform_indices = @transform_5, window_bounds = array<i64: 1>}, {transform_indices = @transform_6, window_bounds = array<i64: 8, 128>}]} {
    %c0 = arith.constant 0 : index
    %c0_0 = arith.constant 0 : index
    %0 = vector.load %arg1[%c0, %c0_0] : memref<8x49xbf16, #tpu.memory_space<vmem>>, vector<8x49xbf16>
    %1 = vector.extract_strided_slice %0 {offsets = [0, 48], sizes = [8, 1], strides = [1, 1]} : vector<8x49xbf16> to vector<8x1xbf16>
    %2 = arith.extf %1 : vector<8x1xbf16> to vector<8x1xf32>
    %c0_1 = arith.constant 0 : index
    %c0_2 = arith.constant 0 : index
    %3 = vector.load %arg3[%c0_1, %c0_2] : memref<49x128xbf16, #tpu.memory_space<vmem>>, vector<49x128xbf16>
    %cst = arith.constant dense<0.000000e+00> : vector<8x128xf32>
    %4 = tpu.matmul %0, %3, %cst {dimension_numbers = #tpu.dot_dimension_numbers<[1], [0], [0], [1], [0, 0, 1, 1], [], []>} : vector<8x49xbf16>, vector<49x128xbf16>, vector<8x128xf32> -> vector<8x128xf32>
    %c0_3 = arith.constant 0 : index
    %c0_4 = arith.constant 0 : index
    %5 = vector.load %arg4[%c0_3, %c0_4] : memref<1x128xf32, #tpu.memory_space<vmem>>, vector<1x128xf32>
    %6 = vector.broadcast %5 : vector<1x128xf32> to vector<8x128xf32>
    %7 = arith.addf %4, %6 : vector<8x128xf32>
    %8 = tpu.iota {dimensions = array<i32: 1>} : vector<8x128xi32>
    %c96_i32 = arith.constant 96 : i32
    %9 = vector.broadcast %c96_i32 : i32 to vector<8x128xi32>
    %10 = arith.cmpi sge, %8, %9 : vector<8x128xi32>
    %11 = math.tanh %7 : vector<8x128xf32>
    %12 = arith.negf %7 : vector<8x128xf32>
    %13 = math.exp %12 : vector<8x128xf32>
    %cst_5 = arith.constant 1.000000e+00 : f32
    %14 = vector.broadcast %cst_5 : f32 to vector<8x128xf32>
    %15 = arith.addf %14, %13 : vector<8x128xf32>
    %16 = arith.divf %14, %15 : vector<8x128xf32>
    %17 = arith.select %10, %11, %16 : vector<8x128xi1>, vector<8x128xf32>
    %18 = vector.extract_strided_slice %17 {offsets = [0, 0], sizes = [8, 32], strides = [1, 1]} : vector<8x128xf32> to vector<8x32xf32>
    %19 = vector.extract_strided_slice %17 {offsets = [0, 32], sizes = [8, 32], strides = [1, 1]} : vector<8x128xf32> to vector<8x32xf32>
    %20 = vector.extract_strided_slice %17 {offsets = [0, 64], sizes = [8, 32], strides = [1, 1]} : vector<8x128xf32> to vector<8x32xf32>
    %21 = vector.extract_strided_slice %17 {offsets = [0, 96], sizes = [8, 32], strides = [1, 1]} : vector<8x128xf32> to vector<8x32xf32>
    %c0_6 = arith.constant 0 : index
    %c0_7 = arith.constant 0 : index
    %22 = vector.load %arg2[%c0_6, %c0_7] : memref<8x32xf32, #tpu.memory_space<vmem>>, vector<8x32xf32>
    %23 = arith.mulf %19, %22 : vector<8x32xf32>
    %24 = arith.mulf %18, %21 : vector<8x32xf32>
    %25 = arith.addf %23, %24 : vector<8x32xf32>
    %26 = math.tanh %25 : vector<8x32xf32>
    %27 = arith.mulf %20, %26 : vector<8x32xf32>
    %28 = vector.broadcast %2 : vector<8x1xf32> to vector<8x32xf32>
    %29 = arith.mulf %27, %28 : vector<8x32xf32>
    %30 = vector.broadcast %2 : vector<8x1xf32> to vector<8x32xf32>
    %31 = arith.mulf %25, %30 : vector<8x32xf32>
    %c0_8 = arith.constant 0 : index
    %c0_9 = arith.constant 0 : index
    %32 = vector.load %arg5[%c0_8, %c0_9] : memref<1x32xf32, #tpu.memory_space<vmem>>, vector<1x32xf32>
    %33 = vector.broadcast %32 : vector<1x32xf32> to vector<8x32xf32>
    %34 = arith.mulf %31, %33 : vector<8x32xf32>
    %cst_10 = arith.constant dense<0.000000e+00> : vector<8xf32>
    %35 = vector.multi_reduction <add>, %34, %cst_10 [1] : vector<8x32xf32> to vector<8xf32>
    %36 = vector.shape_cast %35 : vector<8xf32> to vector<8x1xf32>
    %c0_11 = arith.constant 0 : index
    %37 = memref.load %arg6[%c0_11] : memref<1xf32, #tpu.memory_space<smem>>
    %38 = vector.broadcast %37 : f32 to vector<8x1xf32>
    %39 = arith.addf %36, %38 : vector<8x1xf32>
    %40 = arith.negf %39 : vector<8x1xf32>
    %41 = math.exp %40 : vector<8x1xf32>
    %cst_12 = arith.constant 1.000000e+00 : f32
    %42 = vector.broadcast %cst_12 : f32 to vector<8x1xf32>
    %43 = arith.addf %42, %41 : vector<8x1xf32>
    %44 = arith.divf %42, %43 : vector<8x1xf32>
    %45 = vector.shape_cast %44 : vector<8x1xf32> to vector<8x1xf32>
    %46 = vector.broadcast %45 : vector<8x1xf32> to vector<8x64xf32>
    %47 = tpu.concatenate %29, %31, %46 in 1 : vector<8x32xf32>, vector<8x32xf32>, vector<8x64xf32> -> vector<8x128xf32>
    %c0_13 = arith.constant 0 : index
    %c0_14 = arith.constant 0 : index
    %48 = vector.load %arg7[%c0_13, %c0_14] : memref<8x128xf32, #tpu.memory_space<vmem>>, vector<8x128xf32>
    tpu.vector_store %arg7[%c0_13, %c0_14], %47 {strides = array<i32>} : memref<8x128xf32, #tpu.memory_space<vmem>>, vector<8x128xf32>,
    return
  }
  func.func @transform_0(%arg0: i32) -> (i32, i32) {
    %c0_i32 = arith.constant 0 : i32
    %c0_i32_0 = arith.constant 0 : i32
    return %arg0, %c0_i32 : i32, i32
  }
  func.func @transform_1(%arg0: i32) -> (i32, i32) {
    %c0_i32 = arith.constant 0 : i32
    %c0_i32_0 = arith.constant 0 : i32
    return %arg0, %c0_i32 : i32, i32
  }
  func.func @transform_2(%arg0: i32) -> (i32, i32) {
    %c0_i32 = arith.constant 0 : i32
    %c0_i32_0 = arith.constant 0 : i32
    %c0_i32_1 = arith.constant 0 : i32
    return %c0_i32, %c0_i32_0 : i32, i32
  }
  func.func @transform_3(%arg0: i32) -> (i32, i32) {
    %c0_i32 = arith.constant 0 : i32
    %c0_i32_0 = arith.constant 0 : i32
    %c0_i32_1 = arith.constant 0 : i32
    return %c0_i32, %c0_i32_0 : i32, i32
  }
  func.func @transform_4(%arg0: i32) -> (i32, i32) {
    %c0_i32 = arith.constant 0 : i32
    %c0_i32_0 = arith.constant 0 : i32
    %c0_i32_1 = arith.constant 0 : i32
    return %c0_i32, %c0_i32_0 : i32, i32
  }
  func.func @transform_5(%arg0: i32) -> i32 {
    %c0_i32 = arith.constant 0 : i32
    %c0_i32_0 = arith.constant 0 : i32
    return %c0_i32 : i32
  }
  func.func @transform_6(%arg0: i32) -> (i32, i32) {
    %c0_i32 = arith.constant 0 : i32
    %c0_i32_0 = arith.constant 0 : i32
    return %arg0, %c0_i32 : i32, i32
  }
}

</mosaic_0001>

<llo_original>
// kernel: tpu_custom_call.1
$region0: #{tpu_custom_call.1}
  #allocation0 [shape = 'u32[]', space=smem, size = 0x4, offset = 0x4, fixed_abs, tag = 'smem constant byte address 0x4 - core index']
  #allocation1 [shape = 'u32[144,128]{1,0:T(1,128)}', space=vmem, size = 0x12000, scoped, tag = 'internal scratch']
  #allocation2 [shape = 'f32[1]{0:T(128)S(6)}', space=smem, size = 0x200, scoped, tag = 'scoped memory for tpu_custom_call.1']
  %s0 = inlined_call_operand.hbm [shape: bf16[8,49], index: 0, kind: input, shape index: {}]
  %s1 = inlined_call_operand.hbm [shape: f32[8,32], index: 1, kind: input, shape index: {}]
  %s2 = inlined_call_operand.hbm [shape: bf16[49,128], index: 2, kind: input, shape index: {}]
  %s3 = inlined_call_operand.vmem [shape: f32[1,128], index: 3, kind: input, shape index: {}]
  %s4 = inlined_call_operand.vmem [shape: f32[1,32], index: 4, kind: input, shape index: {}]
  %s5 = inlined_call_operand.<no memory space> [shape: f32[1], index: 5, kind: input, shape index: {}]
  %s6 = inlined_call_operand.hbm [shape: f32[8,128], index: 6, kind: output, shape index: {}]
  %s7 = sld [smem:[#allocation0]]
  $region46: #{tpu_custom_call.1} parent=0
    _
  %s9 = ssub.s32 1, %s7
  %s10 = scalar_select 0, %s9, %s7
  %11 = sst [smem:[#allocation2]] %s5
  $region1: #{tpu_custom_call.1} parent=0
    #allocation3 [shape = 'u8[2048]{0}', space=vmem, size = 0x800, scoped, tag = 'input window, operand 0, single buffered']
    #allocation4 [shape = 's32[1]{0}', space=sflag, size = 0x4, scoped, tag = 'scoped memory for tpu_custom_call.1']
    #allocation5 [shape = 's32[1]{0}', space=sflag, size = 0x4, scoped, tag = 'scoped memory for tpu_custom_call.1']
    #allocation6 [shape = 'u8[4096]{0}', space=vmem, size = 0x1000, scoped, tag = 'input window, operand 1, single buffered']
    #allocation7 [shape = 's32[1]{0}', space=sflag, size = 0x4, scoped, tag = 'scoped memory for tpu_custom_call.1']
    #allocation8 [shape = 'u8[14336]{0}', space=vmem, size = 0x3800, scoped, tag = 'input window, operand 2, single buffered']
    #allocation9 [shape = 'u8[4096]{0}', space=vmem, size = 0x1000, scoped, tag = 'output window, operand 0, single buffered']
    %12 = vsyncpa [#allocation4], 0
    %13 = vsyncpa [#allocation7], 0
    %14 = vsyncpa [#allocation5], 0
    // Predicated region
    $region2: #{tpu_custom_call.1} parent=1 // pred_check
      _
    $region3: #{tpu_custom_call.1} parent=1 // pred_check_branch
      %16 = sbr.rel (0) target = $region5
    $region4: #{tpu_custom_call.1} parent=1 // pred_region
      %s18 = ssub.s32 64, 64
      %19 = vsyncadd [#allocation4], %s18
      %s21 = sshll.u32 [#allocation3], 4
      %s22 = int_to_ptr.vmem [resolvable:$true] %s21
      %24 = dma.hbm_to_vmem [thread:$0]  %s0, 64, %s22, [#allocation4]
    $region5: #{tpu_custom_call.1} parent=1 // pred_fallthru
      _
    // Predicated region
    $region6: #{tpu_custom_call.1} parent=1 // pred_check
      _
    $region7: #{tpu_custom_call.1} parent=1 // pred_check_branch
      %26 = sbr.rel (0) target = $region9
    $region8: #{tpu_custom_call.1} parent=1 // pred_region
      %s28 = ssub.s32 128, 128
      %29 = vsyncadd [#allocation7], %s28
      %s31 = sshll.u32 [#allocation6], 4
      %s32 = int_to_ptr.vmem [resolvable:$true] %s31
      %34 = dma.hbm_to_vmem [thread:$0]  %s1, 128, %s32, [#allocation7]
    $region9: #{tpu_custom_call.1} parent=1 // pred_fallthru
      _
    // Predicated region
    $region10: #{tpu_custom_call.1} parent=1 // pred_check
      _
    $region11: #{tpu_custom_call.1} parent=1 // pred_check_branch
      %36 = sbr.rel (0) target = $region13
    $region12: #{tpu_custom_call.1} parent=1 // pred_region
      %s38 = ssub.s32 448, 448
      %39 = vsyncadd [#allocation7], %s38
      %s40 = sshll.u32 [#allocation8], 4
      %s41 = int_to_ptr.vmem [resolvable:$true] %s40
      %46 = dma.hbm_to_vmem [thread:$0]  %s2, 448, %s41, [#allocation7], 64, 64, 4
    $region13: #{tpu_custom_call.1} parent=1 // pred_fallthru
      _
    // Predicated region
    $region14: #{tpu_custom_call.1} parent=1 // pred_check
      _
    $region15: #{tpu_custom_call.1} parent=1 // pred_check_branch
      %48 = sbr.rel (0) target = $region17
    $region16: #{tpu_custom_call.1} parent=1 // pred_region
      _
    $region17: #{tpu_custom_call.1} parent=1 // pred_fallthru
      _
    // Predicated region
    $region18: #{tpu_custom_call.1} parent=1 // pred_check
      _
    $region19: #{tpu_custom_call.1} parent=1 // pred_check_branch
      %50 = sbr.rel (0) target = $region21
    $region20: #{tpu_custom_call.1} parent=1 // pred_region
      _
    $region21: #{tpu_custom_call.1} parent=1 // pred_fallthru
      _
    // Predicated region
    $region22: #{tpu_custom_call.1} parent=1 // pred_check
      _
    $region23: #{tpu_custom_call.1} parent=1 // pred_check_branch
      %52 = sbr.rel (0) target = $region25
    $region24: #{tpu_custom_call.1} parent=1 // pred_region
      _
    $region25: #{tpu_custom_call.1} parent=1 // pred_fallthru
      _
    // Predicated region
    $region26: #{tpu_custom_call.1} parent=1 // pred_check
      _
    $region27: #{tpu_custom_call.1} parent=1 // pred_check_branch
      %54 = sbr.rel (0) target = $region29
    $region28: #{tpu_custom_call.1} parent=1 // pred_region
      %55 = dma.done [#allocation4], 64
    $region29: #{tpu_custom_call.1} parent=1 // pred_fallthru
      _
    // Predicated region
    $region30: #{tpu_custom_call.1} parent=1 // pred_check
      _
    $region31: #{tpu_custom_call.1} parent=1 // pred_check_branch
      %57 = sbr.rel (0) target = $region33
    $region32: #{tpu_custom_call.1} parent=1 // pred_region
      %58 = dma.done [#allocation7], 128
    $region33: #{tpu_custom_call.1} parent=1 // pred_fallthru
      _
    // Predicated region
    $region34: #{tpu_custom_call.1} parent=1 // pred_check
      _
    $region35: #{tpu_custom_call.1} parent=1 // pred_check_branch
      %60 = sbr.rel (0) target = $region37
    $region36: #{tpu_custom_call.1} parent=1 // pred_region
      %61 = dma.done [#allocation7], 448
    $region37: #{tpu_custom_call.1} parent=1 // pred_fallthru
      _
    %v63 = vld [vmem:[#allocation3] sm:$0xf]
    %v64 = vunpack.c.l.bf16 %v63
    %v65 = vld [vmem:[#allocation8] sm:$0xf]
    %v66 = vld [vmem:[#allocation8 + $0x4] sm:$0xf]
    %v67 = vld [vmem:[#allocation8 + $0x8] sm:$0xf]
    %v68 = vld [vmem:[#allocation8 + $0xc] sm:$0xf]
    %v69 = vld [vmem:[#allocation8 + $0x10] sm:$0xf]
    %v70 = vld [vmem:[#allocation8 + $0x14] sm:$0xf]
    %v71 = vld [vmem:[#allocation8 + $0x18] sm:$0x1]
    %v72 = vld [vmem:[%s3] sm:$0x1]
    %v74 = vlaneseq
    %v75 = vshrl.u32 %v74, 7
    %v76 = vsub.s32 0, %v75
    %v77 = vrot.slane %v72, %v76
    %v86 = vunpack.c.l.b16 %v65
    %v87 = vunpack.c.l.b16 %v66
    %v88 = vunpack.c.l.b16 %v67
    %v89 = vunpack.c.l.b16 %v68
    %v90 = vunpack.c.l.b16 %v69
    %v91 = vunpack.c.l.b16 %v70
    %v92 = vunpack.c.l.b16 %v71
    %v93 = vpack.c.b16 %v87, %v86
    %v94 = vpack.c.b16 %v89, %v88
    %v95 = vpack.c.b16 %v91, %v90
    %v96 = vpack.c.b16 %v92, %v92
    %vm100 = vcmask 400384
    %v102 = vsel %vm100, %v63, 0
    %vm104 = vcmask 1040384
    %v105 = vsel 0, 4294967295, 65535
    %v106 = vsel %vm104, %v105, 0
    %v108 = vand.u32 %v96, %v106
    %110 = vmatprep.subr.bf16.mxu0 0
    %111 = vmatpush1.bf16.msra.mxu0 0
    %112 = vmatprep.subr.bf16.mxu0 0
    %113 = vmatpush1.bf16.msra.mxu0 0
    %114 = vmatprep.subr.bf16.mxu0 0
    %115 = vmatpush1.bf16.msra.mxu0 0
    %116 = vmatprep.subr.bf16.mxu0 0
    %117 = vmatpush1.bf16.msra.mxu0 0
    %118 = vmatprep.subr.bf16.mxu0 0
    %119 = vmatpush1.bf16.msra.mxu0 %v108
    %120 = vmatprep.subr.bf16.mxu0 0
    %121 = vmatpush1.bf16.msra.mxu0 %v95
    %122 = vmatprep.subr.bf16.mxu0 0
    %123 = vmatpush1.bf16.msra.mxu0 %v94
    %124 = vmatprep.subr.bf16.mxu0 0
    %125 = vmatpush1.bf16.msra.mxu0 %v93
    %126 = vmatprep.subr.bf16.mxu0 0
    %127 = vmatpush2.bf16.msra.mxu0 0
    %128 = vmatprep.subr.bf16.mxu0 0
    %129 = vmatpush2.bf16.msra.mxu0 0
    %130 = vmatprep.subr.bf16.mxu0 0
    %131 = vmatpush2.bf16.msra.mxu0 0
    %132 = vmatprep.subr.bf16.mxu0 0
    %133 = vmatpush2.bf16.msra.mxu0 0
    %134 = vmatprep.subr.bf16.mxu0 0
    %135 = vmatpush2.bf16.msra.mxu0 0
    %136 = vmatprep.subr.bf16.mxu0 0
    %137 = vmatpush2.bf16.msra.mxu0 0
    %138 = vmatprep.subr.bf16.mxu0 0
    %139 = vmatpush2.bf16.msra.mxu0 0
    %140 = vmatprep.subr.bf16.mxu0 0
    %141 = vmatpush2.bf16.msra.mxu0 0
    %142 = vmatprep.mubr.bf16.mxu0 0
    %143 = vmatmul.mubr.bf16.gmra.mxu0 %v102
    %v144 = vpop.f32.mrf.mxu0
    %v145 = vadd.f32 %v77, %v144
    %v146 = vpop.f32.mrf.mxu0
    %v147 = vpop.f32.mrf.mxu0
    %v148 = vpop.f32.mrf.mxu0
    %149 = vdwg.mxu0
    %v150 = vlaneseq
    %v151 = vand.u32 %v150, 127
    %vm152 = vcmp.ge.s32.totalorder %v151, 96
    %v153 = vtanh.pop %v145
    %v154 = vxor.u32 %v145, 2147483648
    %v155 = vmul.f32 %v154, 1.442695
    %v156 = vpow.pop %v155
    %v157 = vadd.f32 %v156, 1.0
    %v158 = vrcp.pop %v157
    %v159 = vmul.f32 1.0, %v158
    %v160 = vsel %vm152, %v153, %v159
    %v161 = vld [vmem:[#allocation6] sm:$0xff]
    %163 = vrot.lane.b32.xlu0 %v161, 32
    %v164 = vpop.permute.xlu0 %163
    %v166 = vmul.f32 %v160, %v164
    %168 = vrot.lane.b32.xlu0 %v160, 32
    %v169 = vpop.permute.xlu0 %168
    %v171 = vmul.f32 %v160, %v169
    %173 = vrot.lane.b32.xlu0 %v171, 32
    %v174 = vpop.permute.xlu0 %173
    %v176 = vadd.f32 %v166, %v174
    %v177 = vtanh.pop %v176
    %179 = vrot.lane.b32.xlu0 %v177, 32
    %v180 = vpop.permute.xlu0 %179
    %v182 = vmul.f32 %v160, %v180
    %184 = vset.pattern.permute.xlu0 48
    %185 = vperm.xlu0 %184, %v64
    %v186 = vpop.permute.xlu0 %185
    %v188 = vmul.f32 %v182, %v186
    %v189 = vmul.f32 %v176, %v186
    %v190 = vld [vmem:[%s4] sm:$0x1]
    %v192 = vlaneseq
    %v193 = vshrl.u32 %v192, 7
    %v194 = vsub.s32 0, %v193
    %v195 = vrot.slane %v190, %v194
    %196 = vrot.lane.b32.xlu0 %v195, 32
    %v197 = vpop.permute.xlu0 %196
    %v199 = vmul.f32 %v189, %v197
    %201 = vrot.lane.b32.xlu0 %v199, 96
    %v202 = vpop.permute.xlu0 %201
    %vm204 = vcmask 261120
    %v205 = vsel %vm204, %v202, 0.0
    %206 = vadd.xlane.f32.xlu0 %v205
    %v207 = vpop.xlane.xlu0 %206
    %s208 = sld [smem:[#allocation2]]
    %v209 = vstv %s208
    %v210 = vadd.f32 %v207, %v209
    %v211 = vxor.u32 %v210, 2147483648
    %v212 = vmul.f32 %v211, 1.442695
    %v213 = vpow.pop %v212
    %v214 = vadd.f32 %v213, 1.0
    %v215 = vrcp.pop %v214
    %v216 = vmul.f32 1.0, %v215
    %218 = vrot.lane.b32.xlu0 %v188, 64
    %v219 = vpop.permute.xlu0 %218
    %v221 = vsel %vm204, %v219, %v189
    %vm222 = vcmask 523264
    %v223 = vsel %vm222, %v221, %v216
    %224 = vst [vmem:[#allocation9] sm:$0xff] %v223
    // Predicated region
    $region38: #{tpu_custom_call.1} parent=1 // pred_check
      _
    $region39: #{tpu_custom_call.1} parent=1 // pred_check_branch
      %226 = sbr.rel (0) target = $region41
    $region40: #{tpu_custom_call.1} parent=1 // pred_region
      %s228 = ssub.s32 128, 128
      %229 = vsyncadd [#allocation5], %s228
      %s231 = sshll.u32 [#allocation9], 4
      %s232 = int_to_ptr.vmem [resolvable:$true] %s231
      %234 = dma.vmem_to_hbm [thread:$0]  %s232, 128, %s6, [#allocation5]
    $region41: #{tpu_custom_call.1} parent=1 // pred_fallthru
      _
    // Predicated region
    $region42: #{tpu_custom_call.1} parent=1 // pred_check
      _
    $region43: #{tpu_custom_call.1} parent=1 // pred_check_branch
      %236 = sbr.rel (0) target = $region45
    $region44: #{tpu_custom_call.1} parent=1 // pred_region
      %237 = dma.done [#allocation5], 128
    $region45: #{tpu_custom_call.1} parent=1 // pred_fallthru
      _
    %238 = vsyncpa [#allocation4], 1
    %239 = vsyncpa [#allocation7], 1
    %240 = vsyncpa [#allocation5], 1

</llo_original>
